<compile_context>
chip_gen: v7x
topology: tpu7x:2x2x1
jax: 0.10.0
libtpu: 0.0.40
codegen_flags: <defaults>
</compile_context>

<pallas_src>
import functools

import jax
import jax.numpy as jnp
from jax.experimental import pallas as pl
from jax.experimental.pallas import tpu as pltpu


def _band_matrix(w_dy, W):
    """Fold the dx (column) shift and SAME-conv edge clipping of one kernel
    row into a single block-banded matmul weight.

    w_dy: (3, Cin, Cout)  ->  B: (W*Cin, W*Cout) with
      B[u*Cin + c, v*Cout + o] = sum_dx w_dy[dx, c, o] * [v == u - (dx - 1)]
    so that (rows, W*Cin) @ B applies the whole kernel row to every spatial
    column at once, with zero blocks at the clipped image edges.
    """
    _, cin, cout = w_dy.shape
    b = jnp.zeros((W * cin, W * cout), jnp.float32)
    for dx in range(3):
        shift = jnp.eye(W, k=1 - dx, dtype=jnp.float32)
        b = b + jnp.einsum("uv,co->ucvo", shift,
                           w_dy[dx].astype(jnp.float32)
                           ).reshape(W * cin, W * cout)
    return b


def _layer_tap_weights(w, cx, W, k_pad):
    """Per-dy combined (x | skip) matmul weights, K-padded to k_pad, bf16.

    w: (3, 3, Cin, Cout) HWIO.  Weight rows [0, W*cx) act on the running
    activation, rows [W*cx, W*Cin) on the skip connection (so no channel
    concat is needed anywhere), rows [W*Cin, k_pad) are zero so every layer
    uses the same lane-dense, unsliced K.
    """
    _, _, cin, cout = w.shape
    mats = []
    for dy in range(3):
        bx = _band_matrix(w[dy, :, :cx, :], W)
        if cin > cx:
            bs = _band_matrix(w[dy, :, cx:, :], W)
            b = jnp.concatenate([bx, bs], axis=0)
        else:
            b = bx
        b = jnp.pad(b, ((0, k_pad - b.shape[0]), (0, 0)))
        mats.append(b.astype(jnp.bfloat16))
    return mats


def _decoder_kernel(*refs, N, H, W, layers):
    """Fused decoder forward for the whole batch (single grid step).

    refs = [x_slab, skip slabs (processed order, skip layers only),
            per processed layer: B_dy0, B_dy1, B_dy2, scale, bias,
            out_slab, padded staging scratch]
    layers: tuple of (cx, cs, cout) in processing order (i = depth-1 .. 0).
    """
    band = H + 2
    nb = N * band
    n_skip = sum(1 for (_, cs, _) in layers if cs > 0)

    it = iter(refs)
    x_ref = next(it)
    skip_refs = [next(it) for _ in range(n_skip)]
    layer_refs = [tuple(next(it) for _ in range(5)) for _ in layers]
    o_ref = next(it)
    p_ref = next(it)

    zero_row = jnp.zeros((1, p_ref.shape[1]), p_ref.dtype)

    # Zero the padded staging slab ONCE; this covers every halo row/column of
    # every layer (only polluted halo rows are re-zeroed below).
    p_ref[...] = jnp.zeros(p_ref.shape, p_ref.dtype)

    skip_i = 0
    y = None
    for li, (cx, cs, cout) in enumerate(layers):
        # ---- stage the running activation into columns [0, W*cx) ----------
        if li == 0:
            for n in range(N):
                p_ref[n * band + 2:n * band + 2 + H, :W * cx] = (
                    x_ref[n * H:(n + 1) * H, :].astype(p_ref.dtype))
        else:
            # Previous layer's output has the same padded row layout shifted
            # by one row: one contiguous lane-aligned store, then re-zero the
            # 2N halo rows it polluted.  Activations never leave VMEM/vregs.
            p_ref[1:1 + nb, :W * cx] = y.astype(p_ref.dtype)
            for n in range(N):
                p_ref[n * band + 1:n * band + 2, :] = zero_row
                p_ref[(n + 1) * band:(n + 1) * band + 1, :] = zero_row

        # ---- stage the skip connection into columns [W*cx, W*(cx+cs)) -----
        if cs > 0:
            s_ref = skip_refs[skip_i]
            skip_i += 1
            for n in range(N):
                p_ref[n * band + 2:n * band + 2 + H, W * cx:W * (cx + cs)] = (
                    s_ref[n * H:(n + 1) * H, :].astype(p_ref.dtype))

        # ---- 3x3 conv = 3 lane-aligned matmuls (one per kernel row dy) -----
        b0, b1, b2, sc_ref, bi_ref = layer_refs[li]
        acc = jnp.dot(p_ref[0:nb, :], b0[...],
                      preferred_element_type=jnp.float32)
        acc = acc + jnp.dot(p_ref[1:1 + nb, :], b1[...],
                            preferred_element_type=jnp.float32)
        acc = acc + jnp.dot(p_ref[2:2 + nb, :], b2[...],
                            preferred_element_type=jnp.float32)

        # Folded BatchNorm (eval) + ReLU, in f32.
        y = jnp.maximum(acc * sc_ref[...] + bi_ref[...], 0.0)

        if li == len(layers) - 1:
            # Lane-dense final store (W*Cout lanes wide); drop halo rows.
            for n in range(N):
                o_ref[n * H:(n + 1) * H, :] = (
                    y[n * band + 1:n * band + 1 + H, :].astype(o_ref.dtype))


def decoder_block_forward(x, skip_connections, params):
    """Mirrors Decoder_Block.forward (layers iterated in reverse order),
    fused into a single pallas_call.  x / skips NHWC, weights HWIO."""
    N, H, W, c0 = x.shape
    depth = len(params)
    dtype = x.dtype

    # Channel bookkeeping in processed order (i = depth-1 .. 0).
    layer_meta = []
    cx = c0
    for i in range(depth - 1, -1, -1):
        w, _, _ = params[i]
        cin, cout = w.shape[2], w.shape[3]
        if i != 0:
            cs = cin - cx
            assert cs > 0 and skip_connections[i].shape[-1] == cs, (
                skip_connections[i].shape, cs)
        else:
            cs = 0
            assert cin == cx, (cin, cx)
        layer_meta.append((cx, cs, cout))
        cx = cout
    cout_last = layer_meta[-1][2]
    cmax_in = max(m[0] + m[1] for m in layer_meta)
    k_pad = W * cmax_in

    skip_inputs = []
    weight_inputs = []
    for li, (cx, cs, cout) in enumerate(layer_meta):
        i = depth - 1 - li
        w, scale, bias = params[i]
        if cs > 0:
            skip_inputs.append(skip_connections[i].reshape(N * H, W * cs))
        weight_inputs.extend(_layer_tap_weights(w, cx, W, k_pad))
        weight_inputs.append(
            jnp.tile(scale.astype(jnp.float32), W).reshape(1, W * cout))
        weight_inputs.append(
            jnp.tile(bias.astype(jnp.float32), W).reshape(1, W * cout))

    inputs = [x.reshape(N * H, W * c0)] + skip_inputs + weight_inputs

    def full_spec(a):
        nd = a.ndim
        return pl.BlockSpec(tuple(a.shape), lambda i, _nd=nd: (0,) * _nd)

    kernel = functools.partial(_decoder_kernel, N=N, H=H, W=W,
                               layers=tuple(layer_meta))

    out_slab = pl.pallas_call(
        kernel,
        out_shape=jax.ShapeDtypeStruct((N * H, W * cout_last), dtype),
        grid_spec=pltpu.PrefetchScalarGridSpec(
            num_scalar_prefetch=0,
            grid=(1,),
            in_specs=[full_spec(a) for a in inputs],
            out_specs=pl.BlockSpec((N * H, W * cout_last), lambda i: (0, 0)),
            scratch_shapes=[
                pltpu.VMEM((N * (H + 2) + 2, k_pad), jnp.bfloat16),
            ],
        ),
        compiler_params=pltpu.CompilerParams(
            dimension_semantics=("arbitrary",),
            vmem_limit_bytes=32 * 1024 * 1024,
        ),
    )(*inputs)

    return out_slab.reshape(N, H, W, cout_last)


def init_decoder_params(key, in_channels, mid_channels, d_rate, layer_depth=2):
    """Deterministic synthetic parameters matching _make_decoder_layer shapes."""
    params = []
    c_mid = mid_channels
    eps = 1e-5
    for i in range(layer_depth):
        if i == 0:
            cin, cout = in_channels, mid_channels
        else:
            cin, cout = c_mid, c_mid // d_rate
            c_mid //= d_rate
        key, k1, k2, k3 = jax.random.split(key, 4)
        w = jax.random.normal(k1, (3, 3, cin, cout), jnp.float32) * (
            1.0 / (3 * 3 * cin) ** 0.5)
        gamma = 1.0 + 0.1 * jax.random.normal(k2, (cout,), jnp.float32)
        beta = 0.1 * jax.random.normal(k3, (cout,), jnp.float32)
        running_mean = jnp.zeros((cout,), jnp.float32)
        running_var = jnp.ones((cout,), jnp.float32)
        scale = gamma / jnp.sqrt(running_var + eps)
        bias = beta - running_mean * scale
        params.append((w, scale, bias))
    return params


def _cbr_ref(x, w, scale, bias):
    y = jax.lax.conv_general_dilated(
        x, w, window_strides=(1, 1), padding="SAME",
        dimension_numbers=("NHWC", "HWIO", "NHWC"))
    return jnp.maximum(y * scale + bias, 0.0)


def _decoder_ref(x, skip_connections, params):
    for i in range(len(params) - 1, -1, -1):
        inp = (jnp.concatenate([x, skip_connections[i]], axis=-1)
               if i != 0 else x)
        x = _cbr_ref(inp, *params[i])
    return x


if __name__ == "__main__":
    # Decoder_Block(in_channels=4, mid_channels=8, d_rate=2, layer_depth=2).
    # forward() requires cat(x, skip[1]) to have mid_channels channels and
    # layer[1]'s output (mid_channels // d_rate) to feed layer[0] (in_channels),
    # so in_channels == mid_channels // d_rate.
    in_channels, mid_channels, d_rate = 4, 8, 2
    N, H, W = 2, 16, 16

    key = jax.random.PRNGKey(0)
    kx, ks0, ks1, kp = jax.random.split(key, 4)
    x = jax.random.normal(kx, (N, H, W, in_channels), jnp.float32)
    skip_connections = [
        # skip[0] is never used by forward() (the i == 0 path skips the concat)
        jax.random.normal(ks0, (N, H, W, in_channels), jnp.float32),
        jax.random.normal(ks1, (N, H, W, mid_channels - in_channels),
                          jnp.float32),
    ]
    params = init_decoder_params(kp, in_channels, mid_channels, d_rate,
                                 layer_depth=2)

    out = decoder_block_forward(x, skip_connections, params)
    out = jax.block_until_ready(out)

    ref = _decoder_ref(x, skip_connections, params)
    assert out.shape == (N, H, W, mid_channels), out.shape
    # bf16 matmul operands (f32 accumulation) -> relaxed tolerance.
    assert jnp.allclose(out, ref, atol=5e-2, rtol=5e-2), \
        float(jnp.max(jnp.abs(out - ref)))
    print("KERNEL_OK")
</pallas_src>

<mosaic_0001>
module attributes {stable_mosaic.version = 11 : i64} {
  func.func @_decoder_kernel(%arg0: i32, %arg1: memref<32x64xf32, #tpu.memory_space<vmem>>, %arg2: memref<32x64xf32, #tpu.memory_space<vmem>>, %arg3: memref<128x64xbf16, #tpu.memory_space<vmem>>, %arg4: memref<128x64xbf16, #tpu.memory_space<vmem>>, %arg5: memref<128x64xbf16, #tpu.memory_space<vmem>>, %arg6: memref<1x64xf32, #tpu.memory_space<vmem>>, %arg7: memref<1x64xf32, #tpu.memory_space<vmem>>, %arg8: memref<128x128xbf16, #tpu.memory_space<vmem>>, %arg9: memref<128x128xbf16, #tpu.memory_space<vmem>>, %arg10: memref<128x128xbf16, #tpu.memory_space<vmem>>, %arg11: memref<1x128xf32, #tpu.memory_space<vmem>>, %arg12: memref<1x128xf32, #tpu.memory_space<vmem>>, %arg13: memref<32x128xf32, #tpu.memory_space<vmem>>, %arg14: memref<38x128xbf16, #tpu.memory_space<vmem>>) attributes {dimension_semantics = [#tpu.dimension_semantics<arbitrary>], iteration_bounds = array<i64: 1>, scalar_prefetch = 0 : i64, scratch_operands = 1 : i64, tpu.core_type = #tpu.core_type<tc>, window_params = [{pipeline_mode = #tpu.pipeline_mode<synchronous>, transform_indices = @transform_0, window_bounds = array<i64: 32, 64>}, {pipeline_mode = #tpu.pipeline_mode<synchronous>, transform_indices = @transform_1, window_bounds = array<i64: 32, 64>}, {pipeline_mode = #tpu.pipeline_mode<synchronous>, transform_indices = @transform_2, window_bounds = array<i64: 128, 64>}, {pipeline_mode = #tpu.pipeline_mode<synchronous>, transform_indices = @transform_3, window_bounds = array<i64: 128, 64>}, {pipeline_mode = #tpu.pipeline_mode<synchronous>, transform_indices = @transform_4, window_bounds = array<i64: 128, 64>}, {pipeline_mode = #tpu.pipeline_mode<synchronous>, transform_indices = @transform_5, window_bounds = array<i64: 1, 64>}, {pipeline_mode = #tpu.pipeline_mode<synchronous>, transform_indices = @transform_6, window_bounds = array<i64: 1, 64>}, {pipeline_mode = #tpu.pipeline_mode<synchronous>, transform_indices = @transform_7, window_bounds = array<i64: 128, 128>}, {pipeline_mode = #tpu.pipeline_mode<synchronous>, transform_indices = @transform_8, window_bounds = array<i64: 128, 128>}, {pipeline_mode = #tpu.pipeline_mode<synchronous>, transform_indices = @transform_9, window_bounds = array<i64: 128, 128>}, {pipeline_mode = #tpu.pipeline_mode<synchronous>, transform_indices = @transform_10, window_bounds = array<i64: 1, 128>}, {pipeline_mode = #tpu.pipeline_mode<synchronous>, transform_indices = @transform_11, window_bounds = array<i64: 1, 128>}, {pipeline_mode = #tpu.pipeline_mode<synchronous>, transform_indices = @transform_12, window_bounds = array<i64: 32, 128>}]} {
    %cst = arith.constant 0.000000e+00 : bf16
    %0 = vector.broadcast %cst : bf16 to vector<1x128xbf16>
    %cst_0 = arith.constant 0.000000e+00 : bf16
    %1 = vector.broadcast %cst_0 : bf16 to vector<38x128xbf16>
    %c0 = arith.constant 0 : index
    %c0_1 = arith.constant 0 : index
    %2 = vector.load %arg14[%c0, %c0_1] : memref<38x128xbf16, #tpu.memory_space<vmem>>, vector<38x128xbf16>
    tpu.vector_store %arg14[%c0, %c0_1], %1 {strides = array<i32>} : memref<38x128xbf16, #tpu.memory_space<vmem>>, vector<38x128xbf16>,
    %c0_2 = arith.constant 0 : index
    %c0_3 = arith.constant 0 : index
    %3 = vector.load %arg1[%c0_2, %c0_3] : memref<32x64xf32, #tpu.memory_space<vmem>>, vector<16x64xf32>
    %4 = arith.truncf %3 : vector<16x64xf32> to vector<16x64xbf16>
    %c2 = arith.constant 2 : index
    %c0_4 = arith.constant 0 : index
    %5 = vector.load %arg14[%c2, %c0_4] : memref<38x128xbf16, #tpu.memory_space<vmem>>, vector<16x64xbf16>
    tpu.vector_store %arg14[%c2, %c0_4], %4 {strides = array<i32>} : memref<38x128xbf16, #tpu.memory_space<vmem>>, vector<16x64xbf16>,
    %c16 = arith.constant 16 : index
    %c0_5 = arith.constant 0 : index
    %6 = vector.load %arg1[%c16, %c0_5] : memref<32x64xf32, #tpu.memory_space<vmem>>, vector<16x64xf32>
    %7 = arith.truncf %6 : vector<16x64xf32> to vector<16x64xbf16>
    %c20 = arith.constant 20 : index
    %c0_6 = arith.constant 0 : index
    %8 = vector.load %arg14[%c20, %c0_6] : memref<38x128xbf16, #tpu.memory_space<vmem>>, vector<16x64xbf16>
    tpu.vector_store %arg14[%c20, %c0_6], %7 {strides = array<i32>} : memref<38x128xbf16, #tpu.memory_space<vmem>>, vector<16x64xbf16>,
    %c0_7 = arith.constant 0 : index
    %c0_8 = arith.constant 0 : index
    %9 = vector.load %arg2[%c0_7, %c0_8] : memref<32x64xf32, #tpu.memory_space<vmem>>, vector<16x64xf32>
    %10 = arith.truncf %9 : vector<16x64xf32> to vector<16x64xbf16>
    %c2_9 = arith.constant 2 : index
    %c64 = arith.constant 64 : index
    %11 = vector.load %arg14[%c2_9, %c64] : memref<38x128xbf16, #tpu.memory_space<vmem>>, vector<16x64xbf16>
    tpu.vector_store %arg14[%c2_9, %c64], %10 {strides = array<i32>} : memref<38x128xbf16, #tpu.memory_space<vmem>>, vector<16x64xbf16>,
    %c16_10 = arith.constant 16 : index
    %c0_11 = arith.constant 0 : index
    %12 = vector.load %arg2[%c16_10, %c0_11] : memref<32x64xf32, #tpu.memory_space<vmem>>, vector<16x64xf32>
    %13 = arith.truncf %12 : vector<16x64xf32> to vector<16x64xbf16>
    %c20_12 = arith.constant 20 : index
    %c64_13 = arith.constant 64 : index
    %14 = vector.load %arg14[%c20_12, %c64_13] : memref<38x128xbf16, #tpu.memory_space<vmem>>, vector<16x64xbf16>
    tpu.vector_store %arg14[%c20_12, %c64_13], %13 {strides = array<i32>} : memref<38x128xbf16, #tpu.memory_space<vmem>>, vector<16x64xbf16>,
    %c0_14 = arith.constant 0 : index
    %c0_15 = arith.constant 0 : index
    %15 = vector.load %arg14[%c0_14, %c0_15] : memref<38x128xbf16, #tpu.memory_space<vmem>>, vector<36x128xbf16>
    %c0_16 = arith.constant 0 : index
    %c0_17 = arith.constant 0 : index
    %16 = vector.load %arg3[%c0_16, %c0_17] : memref<128x64xbf16, #tpu.memory_space<vmem>>, vector<128x64xbf16>
    %cst_18 = arith.constant dense<0.000000e+00> : vector<36x64xf32>
    %17 = tpu.matmul %15, %16, %cst_18 {dimension_numbers = #tpu.dot_dimension_numbers<[1], [0], [0], [1], [0, 0, 1, 1], [], []>} : vector<36x128xbf16>, vector<128x64xbf16>, vector<36x64xf32> -> vector<36x64xf32>
    %c1 = arith.constant 1 : index
    %c0_19 = arith.constant 0 : index
    %18 = vector.load %arg14[%c1, %c0_19] : memref<38x128xbf16, #tpu.memory_space<vmem>>, vector<36x128xbf16>
    %c0_20 = arith.constant 0 : index
    %c0_21 = arith.constant 0 : index
    %19 = vector.load %arg4[%c0_20, %c0_21] : memref<128x64xbf16, #tpu.memory_space<vmem>>, vector<128x64xbf16>
    %cst_22 = arith.constant dense<0.000000e+00> : vector<36x64xf32>
    %20 = tpu.matmul %18, %19, %cst_22 {dimension_numbers = #tpu.dot_dimension_numbers<[1], [0], [0], [1], [0, 0, 1, 1], [], []>} : vector<36x128xbf16>, vector<128x64xbf16>, vector<36x64xf32> -> vector<36x64xf32>
    %21 = arith.addf %17, %20 : vector<36x64xf32>
    %c2_23 = arith.constant 2 : index
    %c0_24 = arith.constant 0 : index
    %22 = vector.load %arg14[%c2_23, %c0_24] : memref<38x128xbf16, #tpu.memory_space<vmem>>, vector<36x128xbf16>
    %c0_25 = arith.constant 0 : index
    %c0_26 = arith.constant 0 : index
    %23 = vector.load %arg5[%c0_25, %c0_26] : memref<128x64xbf16, #tpu.memory_space<vmem>>, vector<128x64xbf16>
    %cst_27 = arith.constant dense<0.000000e+00> : vector<36x64xf32>
    %24 = tpu.matmul %22, %23, %cst_27 {dimension_numbers = #tpu.dot_dimension_numbers<[1], [0], [0], [1], [0, 0, 1, 1], [], []>} : vector<36x128xbf16>, vector<128x64xbf16>, vector<36x64xf32> -> vector<36x64xf32>
    %25 = arith.addf %21, %24 : vector<36x64xf32>
    %c0_28 = arith.constant 0 : index
    %c0_29 = arith.constant 0 : index
    %26 = vector.load %arg6[%c0_28, %c0_29] : memref<1x64xf32, #tpu.memory_space<vmem>>, vector<1x64xf32>
    %27 = vector.broadcast %26 : vector<1x64xf32> to vector<36x64xf32>
    %28 = arith.mulf %25, %27 : vector<36x64xf32>
    %c0_30 = arith.constant 0 : index
    %c0_31 = arith.constant 0 : index
    %29 = vector.load %arg7[%c0_30, %c0_31] : memref<1x64xf32, #tpu.memory_space<vmem>>, vector<1x64xf32>
    %30 = vector.broadcast %29 : vector<1x64xf32> to vector<36x64xf32>
    %31 = arith.addf %28, %30 : vector<36x64xf32>
    %cst_32 = arith.constant 0.000000e+00 : f32
    %32 = vector.broadcast %cst_32 : f32 to vector<36x64xf32>
    %33 = arith.maximumf %31, %32 : vector<36x64xf32>
    %34 = arith.truncf %33 : vector<36x64xf32> to vector<36x64xbf16>
    %c1_33 = arith.constant 1 : index
    %c0_34 = arith.constant 0 : index
    %35 = vector.load %arg14[%c1_33, %c0_34] : memref<38x128xbf16, #tpu.memory_space<vmem>>, vector<36x64xbf16>
    tpu.vector_store %arg14[%c1_33, %c0_34], %34 {strides = array<i32>} : memref<38x128xbf16, #tpu.memory_space<vmem>>, vector<36x64xbf16>,
    %c1_35 = arith.constant 1 : index
    %c0_36 = arith.constant 0 : index
    %36 = vector.load %arg14[%c1_35, %c0_36] : memref<38x128xbf16, #tpu.memory_space<vmem>>, vector<1x128xbf16>
    tpu.vector_store %arg14[%c1_35, %c0_36], %0 {strides = array<i32>} : memref<38x128xbf16, #tpu.memory_space<vmem>>, vector<1x128xbf16>,
    %c18 = arith.constant 18 : index
    %c0_37 = arith.constant 0 : index
    %37 = vector.load %arg14[%c18, %c0_37] : memref<38x128xbf16, #tpu.memory_space<vmem>>, vector<1x128xbf16>
    tpu.vector_store %arg14[%c18, %c0_37], %0 {strides = array<i32>} : memref<38x128xbf16, #tpu.memory_space<vmem>>, vector<1x128xbf16>,
    %c19 = arith.constant 19 : index
    %c0_38 = arith.constant 0 : index
    %38 = vector.load %arg14[%c19, %c0_38] : memref<38x128xbf16, #tpu.memory_space<vmem>>, vector<1x128xbf16>
    tpu.vector_store %arg14[%c19, %c0_38], %0 {strides = array<i32>} : memref<38x128xbf16, #tpu.memory_space<vmem>>, vector<1x128xbf16>,
    %c36 = arith.constant 36 : index
    %c0_39 = arith.constant 0 : index
    %39 = vector.load %arg14[%c36, %c0_39] : memref<38x128xbf16, #tpu.memory_space<vmem>>, vector<1x128xbf16>
    tpu.vector_store %arg14[%c36, %c0_39], %0 {strides = array<i32>} : memref<38x128xbf16, #tpu.memory_space<vmem>>, vector<1x128xbf16>,
    %c0_40 = arith.constant 0 : index
    %c0_41 = arith.constant 0 : index
    %40 = vector.load %arg14[%c0_40, %c0_41] : memref<38x128xbf16, #tpu.memory_space<vmem>>, vector<36x128xbf16>
    %c0_42 = arith.constant 0 : index
    %c0_43 = arith.constant 0 : index
    %41 = vector.load %arg8[%c0_42, %c0_43] : memref<128x128xbf16, #tpu.memory_space<vmem>>, vector<128x128xbf16>
    %cst_44 = arith.constant dense<0.000000e+00> : vector<36x128xf32>
    %42 = tpu.matmul %40, %41, %cst_44 {dimension_numbers = #tpu.dot_dimension_numbers<[1], [0], [0], [1], [0, 0, 1, 1], [], []>} : vector<36x128xbf16>, vector<128x128xbf16>, vector<36x128xf32> -> vector<36x128xf32>
    %c1_45 = arith.constant 1 : index
    %c0_46 = arith.constant 0 : index
    %43 = vector.load %arg14[%c1_45, %c0_46] : memref<38x128xbf16, #tpu.memory_space<vmem>>, vector<36x128xbf16>
    %c0_47 = arith.constant 0 : index
    %c0_48 = arith.constant 0 : index
    %44 = vector.load %arg9[%c0_47, %c0_48] : memref<128x128xbf16, #tpu.memory_space<vmem>>, vector<128x128xbf16>
    %cst_49 = arith.constant dense<0.000000e+00> : vector<36x128xf32>
    %45 = tpu.matmul %43, %44, %cst_49 {dimension_numbers = #tpu.dot_dimension_numbers<[1], [0], [0], [1], [0, 0, 1, 1], [], []>} : vector<36x128xbf16>, vector<128x128xbf16>, vector<36x128xf32> -> vector<36x128xf32>
    %46 = arith.addf %42, %45 : vector<36x128xf32>
    %c2_50 = arith.constant 2 : index
    %c0_51 = arith.constant 0 : index
    %47 = vector.load %arg14[%c2_50, %c0_51] : memref<38x128xbf16, #tpu.memory_space<vmem>>, vector<36x128xbf16>
    %c0_52 = arith.constant 0 : index
    %c0_53 = arith.constant 0 : index
    %48 = vector.load %arg10[%c0_52, %c0_53] : memref<128x128xbf16, #tpu.memory_space<vmem>>, vector<128x128xbf16>
    %cst_54 = arith.constant dense<0.000000e+00> : vector<36x128xf32>
    %49 = tpu.matmul %47, %48, %cst_54 {dimension_numbers = #tpu.dot_dimension_numbers<[1], [0], [0], [1], [0, 0, 1, 1], [], []>} : vector<36x128xbf16>, vector<128x128xbf16>, vector<36x128xf32> -> vector<36x128xf32>
    %50 = arith.addf %46, %49 : vector<36x128xf32>
    %c0_55 = arith.constant 0 : index
    %c0_56 = arith.constant 0 : index
    %51 = vector.load %arg11[%c0_55, %c0_56] : memref<1x128xf32, #tpu.memory_space<vmem>>, vector<1x128xf32>
    %52 = vector.broadcast %51 : vector<1x128xf32> to vector<36x128xf32>
    %53 = arith.mulf %50, %52 : vector<36x128xf32>
    %c0_57 = arith.constant 0 : index
    %c0_58 = arith.constant 0 : index
    %54 = vector.load %arg12[%c0_57, %c0_58] : memref<1x128xf32, #tpu.memory_space<vmem>>, vector<1x128xf32>
    %55 = vector.broadcast %54 : vector<1x128xf32> to vector<36x128xf32>
    %56 = arith.addf %53, %55 : vector<36x128xf32>
    %cst_59 = arith.constant 0.000000e+00 : f32
    %57 = vector.broadcast %cst_59 : f32 to vector<36x128xf32>
    %58 = arith.maximumf %56, %57 : vector<36x128xf32>
    %59 = vector.extract_strided_slice %58 {offsets = [1, 0], sizes = [16, 128], strides = [1, 1]} : vector<36x128xf32> to vector<16x128xf32>
    %c0_60 = arith.constant 0 : index
    %c0_61 = arith.constant 0 : index
    %60 = vector.load %arg13[%c0_60, %c0_61] : memref<32x128xf32, #tpu.memory_space<vmem>>, vector<16x128xf32>
    tpu.vector_store %arg13[%c0_60, %c0_61], %59 {strides = array<i32>} : memref<32x128xf32, #tpu.memory_space<vmem>>, vector<16x128xf32>,
    %61 = vector.extract_strided_slice %58 {offsets = [19, 0], sizes = [16, 128], strides = [1, 1]} : vector<36x128xf32> to vector<16x128xf32>
    %c16_62 = arith.constant 16 : index
    %c0_63 = arith.constant 0 : index
    %62 = vector.load %arg13[%c16_62, %c0_63] : memref<32x128xf32, #tpu.memory_space<vmem>>, vector<16x128xf32>
    tpu.vector_store %arg13[%c16_62, %c0_63], %61 {strides = array<i32>} : memref<32x128xf32, #tpu.memory_space<vmem>>, vector<16x128xf32>,
    return
  }
  func.func @transform_0(%arg0: i32) -> (i32, i32) {
    %c0_i32 = arith.constant 0 : i32
    %c0_i32_0 = arith.constant 0 : i32
    %c0_i32_1 = arith.constant 0 : i32
    return %c0_i32, %c0_i32_0 : i32, i32
  }
  func.func @transform_1(%arg0: i32) -> (i32, i32) {
    %c0_i32 = arith.constant 0 : i32
    %c0_i32_0 = arith.constant 0 : i32
    %c0_i32_1 = arith.constant 0 : i32
    return %c0_i32, %c0_i32_0 : i32, i32
  }
  func.func @transform_2(%arg0: i32) -> (i32, i32) {
    %c0_i32 = arith.constant 0 : i32
    %c0_i32_0 = arith.constant 0 : i32
    %c0_i32_1 = arith.constant 0 : i32
    return %c0_i32, %c0_i32_0 : i32, i32
  }
  func.func @transform_3(%arg0: i32) -> (i32, i32) {
    %c0_i32 = arith.constant 0 : i32
    %c0_i32_0 = arith.constant 0 : i32
    %c0_i32_1 = arith.constant 0 : i32
    return %c0_i32, %c0_i32_0 : i32, i32
  }
  func.func @transform_4(%arg0: i32) -> (i32, i32) {
    %c0_i32 = arith.constant 0 : i32
    %c0_i32_0 = arith.constant 0 : i32
    %c0_i32_1 = arith.constant 0 : i32
    return %c0_i32, %c0_i32_0 : i32, i32
  }
  func.func @transform_5(%arg0: i32) -> (i32, i32) {
    %c0_i32 = arith.constant 0 : i32
    %c0_i32_0 = arith.constant 0 : i32
    %c0_i32_1 = arith.constant 0 : i32
    return %c0_i32, %c0_i32_0 : i32, i32
  }
  func.func @transform_6(%arg0: i32) -> (i32, i32) {
    %c0_i32 = arith.constant 0 : i32
    %c0_i32_0 = arith.constant 0 : i32
    %c0_i32_1 = arith.constant 0 : i32
    return %c0_i32, %c0_i32_0 : i32, i32
  }
  func.func @transform_7(%arg0: i32) -> (i32, i32) {
    %c0_i32 = arith.constant 0 : i32
    %c0_i32_0 = arith.constant 0 : i32
    %c0_i32_1 = arith.constant 0 : i32
    return %c0_i32, %c0_i32_0 : i32, i32
  }
  func.func @transform_8(%arg0: i32) -> (i32, i32) {
    %c0_i32 = arith.constant 0 : i32
    %c0_i32_0 = arith.constant 0 : i32
    %c0_i32_1 = arith.constant 0 : i32
    return %c0_i32, %c0_i32_0 : i32, i32
  }
  func.func @transform_9(%arg0: i32) -> (i32, i32) {
    %c0_i32 = arith.constant 0 : i32
    %c0_i32_0 = arith.constant 0 : i32
    %c0_i32_1 = arith.constant 0 : i32
    return %c0_i32, %c0_i32_0 : i32, i32
  }
  func.func @transform_10(%arg0: i32) -> (i32, i32) {
    %c0_i32 = arith.constant 0 : i32
    %c0_i32_0 = arith.constant 0 : i32
    %c0_i32_1 = arith.constant 0 : i32
    return %c0_i32, %c0_i32_0 : i32, i32
  }
  func.func @transform_11(%arg0: i32) -> (i32, i32) {
    %c0_i32 = arith.constant 0 : i32
    %c0_i32_0 = arith.constant 0 : i32
    %c0_i32_1 = arith.constant 0 : i32
    return %c0_i32, %c0_i32_0 : i32, i32
  }
  func.func @transform_12(%arg0: i32) -> (i32, i32) {
    %c0_i32 = arith.constant 0 : i32
    %c0_i32_0 = arith.constant 0 : i32
    %c0_i32_1 = arith.constant 0 : i32
    return %c0_i32, %c0_i32_0 : i32, i32
  }
}

</mosaic_0001>

<llo_original>
// kernel: tpu_custom_call.1
$region0: #{tpu_custom_call.1}
  #allocation0 [shape = 'u32[]', space=smem, size = 0x4, offset = 0x4, fixed_abs, tag = 'smem constant byte address 0x4 - core index']
  #allocation1 [shape = 'u32[144,128]{1,0:T(1,128)}', space=vmem, size = 0x12000, scoped, tag = 'internal scratch']
  #allocation2 [shape = 'bf16[38,128]{1,0:T(8,128)(2,1)}', space=vmem, size = 0x2800, scoped, tag = 'scratch operand']
  %s0 = inlined_call_operand.vmem [shape: f32[32,64], index: 0, kind: input, shape index: {}]
  %s1 = inlined_call_operand.hbm [shape: f32[32,64], index: 1, kind: input, shape index: {}]
  %s2 = inlined_call_operand.vmem [shape: bf16[128,64], index: 2, kind: input, shape index: {}]
  %s3 = inlined_call_operand.vmem [shape: bf16[128,64], index: 3, kind: input, shape index: {}]
  %s4 = inlined_call_operand.vmem [shape: bf16[128,64], index: 4, kind: input, shape index: {}]
  %s5 = inlined_call_operand.vmem [shape: f32[1,64], index: 5, kind: input, shape index: {}]
  %s6 = inlined_call_operand.vmem [shape: f32[1,64], index: 6, kind: input, shape index: {}]
  %s7 = inlined_call_operand.vmem [shape: bf16[128,128], index: 7, kind: input, shape index: {}]
  %s8 = inlined_call_operand.vmem [shape: bf16[128,128], index: 8, kind: input, shape index: {}]
  %s9 = inlined_call_operand.vmem [shape: bf16[128,128], index: 9, kind: input, shape index: {}]
  %s10 = inlined_call_operand.vmem [shape: f32[1,128], index: 10, kind: input, shape index: {}]
  %s11 = inlined_call_operand.vmem [shape: f32[1,128], index: 11, kind: input, shape index: {}]
  %s12 = inlined_call_operand.hbm [shape: f32[32,128], index: 12, kind: output, shape index: {}]
  %s13 = sld [smem:[#allocation0]]
  $region62: #{tpu_custom_call.1} parent=0
    _
  %s15 = ssub.s32 1, %s13
  %s16 = scalar_select 0, %s15, %s13
  $region1: #{tpu_custom_call.1} parent=0
    #allocation3 [shape = 'u8[16384]{0}', space=vmem, size = 0x4000, scoped, tag = 'input window, operand 1, single buffered']
    #allocation4 [shape = 's32[1]{0}', space=sflag, size = 0x4, scoped, tag = 'scoped memory for tpu_custom_call.1']
    #allocation5 [shape = 's32[1]{0}', space=sflag, size = 0x4, scoped, tag = 'scoped memory for tpu_custom_call.1']
    #allocation6 [shape = 'u8[16384]{0}', space=vmem, size = 0x4000, scoped, tag = 'output window, operand 0, single buffered']
    %17 = vsyncpa [#allocation4], 0
    %18 = vsyncpa [#allocation5], 0
    // Predicated region
    $region2: #{tpu_custom_call.1} parent=1 // pred_check
      _
    $region3: #{tpu_custom_call.1} parent=1 // pred_check_branch
      %20 = sbr.rel (0) target = $region5
    $region4: #{tpu_custom_call.1} parent=1 // pred_region
      _
    $region5: #{tpu_custom_call.1} parent=1 // pred_fallthru
      _
    // Predicated region
    $region6: #{tpu_custom_call.1} parent=1 // pred_check
      _
    $region7: #{tpu_custom_call.1} parent=1 // pred_check_branch
      %22 = sbr.rel (0) target = $region9
    $region8: #{tpu_custom_call.1} parent=1 // pred_region
      %s24 = ssub.s32 512, 512
      %25 = vsyncadd [#allocation4], %s24
      %s26 = sshll.u32 [#allocation3], 4
      %s27 = int_to_ptr.vmem [resolvable:$true] %s26
      %32 = dma.hbm_to_vmem [thread:$0]  %s1, 512, %s27, [#allocation4], 128, 128, 8
    $region9: #{tpu_custom_call.1} parent=1 // pred_fallthru
      _
    // Predicated region
    $region10: #{tpu_custom_call.1} parent=1 // pred_check
      _
    $region11: #{tpu_custom_call.1} parent=1 // pred_check_branch
      %34 = sbr.rel (0) target = $region13
    $region12: #{tpu_custom_call.1} parent=1 // pred_region
      _
    $region13: #{tpu_custom_call.1} parent=1 // pred_fallthru
      _
    // Predicated region
    $region14: #{tpu_custom_call.1} parent=1 // pred_check
      _
    $region15: #{tpu_custom_call.1} parent=1 // pred_check_branch
      %36 = sbr.rel (0) target = $region17
    $region16: #{tpu_custom_call.1} parent=1 // pred_region
      _
    $region17: #{tpu_custom_call.1} parent=1 // pred_fallthru
      _
    // Predicated region
    $region18: #{tpu_custom_call.1} parent=1 // pred_check
      _
    $region19: #{tpu_custom_call.1} parent=1 // pred_check_branch
      %38 = sbr.rel (0) target = $region21
    $region20: #{tpu_custom_call.1} parent=1 // pred_region
      _
    $region21: #{tpu_custom_call.1} parent=1 // pred_fallthru
      _
    // Predicated region
    $region22: #{tpu_custom_call.1} parent=1 // pred_check
      _
    $region23: #{tpu_custom_call.1} parent=1 // pred_check_branch
      %40 = sbr.rel (0) target = $region25
    $region24: #{tpu_custom_call.1} parent=1 // pred_region
      _
    $region25: #{tpu_custom_call.1} parent=1 // pred_fallthru
      _
    // Predicated region
    $region26: #{tpu_custom_call.1} parent=1 // pred_check
      _
    $region27: #{tpu_custom_call.1} parent=1 // pred_check_branch
      %42 = sbr.rel (0) target = $region29
    $region28: #{tpu_custom_call.1} parent=1 // pred_region
      _
    $region29: #{tpu_custom_call.1} parent=1 // pred_fallthru
      _
    // Predicated region
    $region30: #{tpu_custom_call.1} parent=1 // pred_check
      _
    $region31: #{tpu_custom_call.1} parent=1 // pred_check_branch
      %44 = sbr.rel (0) target = $region33
    $region32: #{tpu_custom_call.1} parent=1 // pred_region
      _
    $region33: #{tpu_custom_call.1} parent=1 // pred_fallthru
      _
    // Predicated region
    $region34: #{tpu_custom_call.1} parent=1 // pred_check
      _
    $region35: #{tpu_custom_call.1} parent=1 // pred_check_branch
      %46 = sbr.rel (0) target = $region37
    $region36: #{tpu_custom_call.1} parent=1 // pred_region
      _
    $region37: #{tpu_custom_call.1} parent=1 // pred_fallthru
      _
    // Predicated region
    $region38: #{tpu_custom_call.1} parent=1 // pred_check
      _
    $region39: #{tpu_custom_call.1} parent=1 // pred_check_branch
      %48 = sbr.rel (0) target = $region41
    $region40: #{tpu_custom_call.1} parent=1 // pred_region
      _
    $region41: #{tpu_custom_call.1} parent=1 // pred_fallthru
      _
    // Predicated region
    $region42: #{tpu_custom_call.1} parent=1 // pred_check
      _
    $region43: #{tpu_custom_call.1} parent=1 // pred_check_branch
      %50 = sbr.rel (0) target = $region45
    $region44: #{tpu_custom_call.1} parent=1 // pred_region
      _
    $region45: #{tpu_custom_call.1} parent=1 // pred_fallthru
      _
    // Predicated region
    $region46: #{tpu_custom_call.1} parent=1 // pred_check
      _
    $region47: #{tpu_custom_call.1} parent=1 // pred_check_branch
      %52 = sbr.rel (0) target = $region49
    $region48: #{tpu_custom_call.1} parent=1 // pred_region
      _
    $region49: #{tpu_custom_call.1} parent=1 // pred_fallthru
      _
    // Predicated region
    $region50: #{tpu_custom_call.1} parent=1 // pred_check
      _
    $region51: #{tpu_custom_call.1} parent=1 // pred_check_branch
      %54 = sbr.rel (0) target = $region53
    $region52: #{tpu_custom_call.1} parent=1 // pred_region
      %55 = dma.done [#allocation4], 512
    $region53: #{tpu_custom_call.1} parent=1 // pred_fallthru
      _
    %57 = vst [vmem:[#allocation2] sm:$0xf] 0
    %58 = vst [vmem:[#allocation2 + $0x4] sm:$0xf] 0
    %59 = vst [vmem:[#allocation2 + $0x8] sm:$0xf] 0
    %60 = vst [vmem:[#allocation2 + $0xc] sm:$0xf] 0
    %61 = vst [vmem:[#allocation2 + $0x10] sm:$0x7] 0
    %v62 = vld [vmem:[%s0] sm:$0xff]
    %v63 = vld [vmem:[%s0 + $0x8] sm:$0xff]
    %v64 = vpack.c.bf16 %v63, %v62
    %v66 = vunpack.c.l.b16 %v64
    %v67 = vunpack.c.h.b16 %v64
    %v68 = vpack.c.b16 %v66, %v66
    %v69 = vpack.c.b16 %v67, %v67
    %vm70 = vcmask 1040384
    %vm71 = vcmask 1044484
    %vm72 = vmor %vm70, %vm71
    %v73 = vrot.slane %v68, 7
    %v74 = vrot.slane %v73, 4
    %v75 = vrot.slane %v69, 7
    %v76 = vsel %vm72, %v74, %v75
    %v77 = vrot.slane %v75, 4
    %vm81 = vcmask 519169
    %82 = vst.msk [vmem:[#allocation2] sm:$0xe] %vm81, %v73
    %vm83 = vcmask 519168
    %84 = vst.msk [vmem:[#allocation2 + $0x4] sm:$0xf] %vm83, %v76
    %vm85 = vcmask 516096
    %86 = vst.msk [vmem:[#allocation2 + $0x8] sm:$0x1] %vm85, %v77
    %v87 = vld [vmem:[%s0 + $0x10] sm:$0xff]
    %v88 = vld [vmem:[%s0 + $0x18] sm:$0xff]
    %v89 = vpack.c.bf16 %v88, %v87
    %v91 = vunpack.c.l.b16 %v89
    %v92 = vunpack.c.h.b16 %v89
    %v93 = vpack.c.b16 %v91, %v91
    %v94 = vpack.c.b16 %v92, %v92
    %vm95 = vcmask 1041408
    %vm96 = vcmask 1045508
    %vm97 = vmor %vm95, %vm96
    %v98 = vrot.slane %v93, 6
    %v99 = vrot.slane %v98, 4
    %v100 = vrot.slane %v94, 6
    %v101 = vsel %vm97, %v99, %v100
    %v102 = vrot.slane %v100, 4
    %vm106 = vcmask 519170
    %107 = vst.msk [vmem:[#allocation2 + $0x8] sm:$0xc] %vm106, %v98
    %108 = vst.msk [vmem:[#allocation2 + $0xc] sm:$0xf] %vm83, %v101
    %vm109 = vcmask 517120
    %110 = vst.msk [vmem:[#allocation2 + $0x10] sm:$0x3] %vm109, %v102
    %v111 = vld [vmem:[#allocation3] sm:$0xff]
    %v112 = vld [vmem:[#allocation3 + $0x8] sm:$0xff]
    %v113 = vpack.c.bf16 %v112, %v111
    %v115 = vunpack.c.l.b16 %v113
    %v116 = vunpack.c.h.b16 %v113
    %v117 = vpack.c.b16 %v115, %v115
    %v118 = vpack.c.b16 %v116, %v116
    %v119 = vrot.slane %v117, 7
    %v120 = vrot.slane %v119, 4
    %v121 = vrot.slane %v118, 7
    %v122 = vsel %vm72, %v120, %v121
    %v123 = vrot.slane %v121, 4
    %124 = vrot.lane.b32.xlu0 %v119, 64
    %v125 = vpop.permute.xlu0 %124
    %126 = vrot.lane.b32.xlu0 %v122, 64
    %v127 = vpop.permute.xlu0 %126
    %128 = vrot.lane.b32.xlu0 %v123, 64
    %v129 = vpop.permute.xlu0 %128
    %vm133 = vcmask 1043969
    %134 = vst.msk [vmem:[#allocation2] sm:$0xe] %vm133, %v125
    %vm135 = vcmask 1043968
    %136 = vst.msk [vmem:[#allocation2 + $0x4] sm:$0xf] %vm135, %v127
    %vm137 = vcmask 1040896
    %138 = vst.msk [vmem:[#allocation2 + $0x8] sm:$0x1] %vm137, %v129
    %v139 = vld [vmem:[#allocation3 + $0x10] sm:$0xff]
    %v140 = vld [vmem:[#allocation3 + $0x18] sm:$0xff]
    %v141 = vpack.c.bf16 %v140, %v139
    %v143 = vunpack.c.l.b16 %v141
    %v144 = vunpack.c.h.b16 %v141
    %v145 = vpack.c.b16 %v143, %v143
    %v146 = vpack.c.b16 %v144, %v144
    %v147 = vrot.slane %v145, 6
    %v148 = vrot.slane %v147, 4
    %v149 = vrot.slane %v146, 6
    %v150 = vsel %vm97, %v148, %v149
    %v151 = vrot.slane %v149, 4
    %152 = vrot.lane.b32.xlu0 %v147, 64
    %v153 = vpop.permute.xlu0 %152
    %154 = vrot.lane.b32.xlu0 %v150, 64
    %v155 = vpop.permute.xlu0 %154
    %156 = vrot.lane.b32.xlu0 %v151, 64
    %v157 = vpop.permute.xlu0 %156
    %vm161 = vcmask 1043970
    %162 = vst.msk [vmem:[#allocation2 + $0x8] sm:$0xc] %vm161, %v153
    %163 = vst.msk [vmem:[#allocation2 + $0xc] sm:$0xf] %vm135, %v155
    %vm164 = vcmask 1041920
    %165 = vst.msk [vmem:[#allocation2 + $0x10] sm:$0x3] %vm164, %v157
    %v166 = vld [vmem:[#allocation2] sm:$0xf]
    %v167 = vld [vmem:[#allocation2 + $0x4] sm:$0xf]
    %v168 = vld [vmem:[#allocation2 + $0x8] sm:$0xf]
    %v169 = vld [vmem:[#allocation2 + $0xc] sm:$0xf]
    %v170 = vld [vmem:[#allocation2 + $0x10] sm:$0x3]
    %v171 = vld [vmem:[%s2] sm:$0xf]
    %v172 = vld [vmem:[%s2 + $0x4] sm:$0xf]
    %v173 = vld [vmem:[%s2 + $0x8] sm:$0xf]
    %v174 = vld [vmem:[%s2 + $0xc] sm:$0xf]
    %v175 = vld [vmem:[%s2 + $0x10] sm:$0xf]
    %v176 = vld [vmem:[%s2 + $0x14] sm:$0xf]
    %v177 = vld [vmem:[%s2 + $0x18] sm:$0xf]
    %v178 = vld [vmem:[%s2 + $0x1c] sm:$0xf]
    %v179 = vld [vmem:[%s2 + $0x20] sm:$0xf]
    %v180 = vld [vmem:[%s2 + $0x24] sm:$0xf]
    %v181 = vld [vmem:[%s2 + $0x28] sm:$0xf]
    %v182 = vld [vmem:[%s2 + $0x2c] sm:$0xf]
    %v183 = vld [vmem:[%s2 + $0x30] sm:$0xf]
    %v184 = vld [vmem:[%s2 + $0x34] sm:$0xf]
    %v185 = vld [vmem:[%s2 + $0x38] sm:$0xf]
    %v186 = vld [vmem:[%s2 + $0x3c] sm:$0xf]
    %v187 = vld [vmem:[#allocation2 + $0x10] sm:$0x7]
    %v188 = vld [vmem:[%s3] sm:$0xf]
    %v189 = vld [vmem:[%s3 + $0x4] sm:$0xf]
    %v190 = vld [vmem:[%s3 + $0x8] sm:$0xf]
    %v191 = vld [vmem:[%s3 + $0xc] sm:$0xf]
    %v192 = vld [vmem:[%s3 + $0x10] sm:$0xf]
    %v193 = vld [vmem:[%s3 + $0x14] sm:$0xf]
    %v194 = vld [vmem:[%s3 + $0x18] sm:$0xf]
    %v195 = vld [vmem:[%s3 + $0x1c] sm:$0xf]
    %v196 = vld [vmem:[%s3 + $0x20] sm:$0xf]
    %v197 = vld [vmem:[%s3 + $0x24] sm:$0xf]
    %v198 = vld [vmem:[%s3 + $0x28] sm:$0xf]
    %v199 = vld [vmem:[%s3 + $0x2c] sm:$0xf]
    %v200 = vld [vmem:[%s3 + $0x30] sm:$0xf]
    %v201 = vld [vmem:[%s3 + $0x34] sm:$0xf]
    %v202 = vld [vmem:[%s3 + $0x38] sm:$0xf]
    %v203 = vld [vmem:[%s3 + $0x3c] sm:$0xf]
    %v209 = vunpack.c.l.b16 %v166
    %v210 = vunpack.c.l.b16 %v167
    %v211 = vunpack.c.l.b16 %v168
    %v212 = vunpack.c.l.b16 %v169
    %v213 = vunpack.c.l.b16 %v187
    %v214 = vpack.c.b16 %v210, %v209
    %v215 = vpack.c.b16 %v212, %v211
    %v216 = vpack.c.b16 %v213, %v213
    %vm217 = vsmask.f32 7424
    %v219 = vshrl.u32 %v214, 16
    %v221 = vshll.u32 %v214, 16
    %v223 = vrot.slane %v221, 1
    %v224 = vor.u32 %v219, %v223
    %v226 = vshll.u32 %v215, 16
    %v228 = vrot.slane %v226, 1
    %v229 = vsel %vm217, %v224, %v228
    %v230 = vshrl.u32 %v215, 16
    %v232 = vor.u32 %v230, %v228
    %v234 = vshll.u32 %v216, 16
    %v236 = vrot.slane %v234, 1
    %v237 = vsel %vm217, %v232, %v236
    %v238 = vshrl.u32 %v216, 16
    %v240 = vor.u32 %v238, %v236
    %v260 = vunpack.c.l.b16 %v188
    %v261 = vunpack.c.l.b16 %v189
    %v262 = vunpack.c.l.b16 %v190
    %v263 = vunpack.c.l.b16 %v191
    %v264 = vunpack.c.l.b16 %v192
    %v265 = vunpack.c.l.b16 %v193
    %v266 = vunpack.c.l.b16 %v194
    %v267 = vunpack.c.l.b16 %v195
    %v268 = vunpack.c.l.b16 %v196
    %v269 = vunpack.c.l.b16 %v197
    %v270 = vunpack.c.l.b16 %v198
    %v271 = vunpack.c.l.b16 %v199
    %v272 = vunpack.c.l.b16 %v200
    %v273 = vunpack.c.l.b16 %v201
    %v274 = vunpack.c.l.b16 %v202
    %v275 = vunpack.c.l.b16 %v203
    %v276 = vpack.c.b16 %v261, %v260
    %v277 = vpack.c.b16 %v263, %v262
    %v278 = vpack.c.b16 %v265, %v264
    %v279 = vpack.c.b16 %v267, %v266
    %v280 = vpack.c.b16 %v269, %v268
    %v281 = vpack.c.b16 %v271, %v270
    %v282 = vpack.c.b16 %v273, %v272
    %v283 = vpack.c.b16 %v275, %v274
    %292 = vmatprep.subr.bf16.mxu0 0
    %293 = vmatpush1.bf16.msra.mxu0 %v276
    %294 = vmatprep.subr.bf16.mxu0 0
    %295 = vmatpush1.bf16.msra.mxu0 %v277
    %296 = vmatprep.subr.bf16.mxu0 0
    %297 = vmatpush1.bf16.msra.mxu0 %v278
    %298 = vmatprep.subr.bf16.mxu0 0
    %299 = vmatpush1.bf16.msra.mxu0 %v279
    %300 = vmatprep.subr.bf16.mxu0 0
    %301 = vmatpush1.bf16.msra.mxu0 %v280
    %302 = vmatprep.subr.bf16.mxu0 0
    %303 = vmatpush1.bf16.msra.mxu0 %v281
    %304 = vmatprep.subr.bf16.mxu0 0
    %305 = vmatpush1.bf16.msra.mxu0 %v282
    %306 = vmatprep.subr.bf16.mxu0 0
    %307 = vmatpush1.bf16.msra.mxu0 %v283
    %308 = vmatprep.subr.bf16.mxu0 0
    %309 = vmatpush1.bf16.msra.mxu0 0
    %310 = vmatprep.subr.bf16.mxu0 0
    %311 = vmatpush1.bf16.msra.mxu0 0
    %312 = vmatprep.subr.bf16.mxu0 0
    %313 = vmatpush1.bf16.msra.mxu0 0
    %314 = vmatprep.subr.bf16.mxu0 0
    %315 = vmatpush1.bf16.msra.mxu0 0
    %316 = vmatprep.subr.bf16.mxu0 0
    %317 = vmatpush1.bf16.msra.mxu0 0
    %318 = vmatprep.subr.bf16.mxu0 0
    %319 = vmatpush1.bf16.msra.mxu0 0
    %320 = vmatprep.subr.bf16.mxu0 0
    %321 = vmatpush1.bf16.msra.mxu0 0
    %322 = vmatprep.subr.bf16.mxu0 0
    %323 = vmatpush1.bf16.msra.mxu0 0
    %324 = vmatprep.mubr.bf16.mxu0 0
    %325 = vmatmul.mubr.bf16.gmra.mrb[0].mxu0 %v229
    %v326 = vpop.f32.mrb[0].mxu0
    %v327 = vadd.f32 0.0, %v326
    %v328 = vpop.f32.mrb[0].mxu0
    %v329 = vpop.f32.mrb[0].mxu0
    %v330 = vadd.f32 0.0, %v329
    %v331 = vpop.f32.mrb[0].mxu0
    %332 = vmatprep.mubr.bf16.mxu0 0
    %333 = vmatmul.mubr.bf16.gmra.mrb[0].mxu0 %v237
    %v334 = vpop.f32.mrb[0].mxu0
    %v335 = vadd.f32 0.0, %v334
    %v336 = vpop.f32.mrb[0].mxu0
    %v337 = vpop.f32.mrb[0].mxu0
    %v338 = vadd.f32 0.0, %v337
    %v339 = vpop.f32.mrb[0].mxu0
    %340 = vmatprep.mubr.bf16.mxu0 0
    %341 = vmatmul.mubr.bf16.gmra.mrb[0].mxu0 %v240
    %v342 = vpop.f32.mrb[0].mxu0
    %v343 = vadd.f32 0.0, %v342
    %v344 = vpop.f32.mrb[0].mxu0
    %v345 = vpop.f32.mrb[0].mxu0
    %v346 = vpop.f32.mrb[0].mxu0
    %347 = vdwg.mxu0
    %v349 = vunpack.c.l.b16 %v170
    %v350 = vpack.c.b16 %v349, %v349
    %v370 = vunpack.c.l.b16 %v171
    %v371 = vunpack.c.l.b16 %v172
    %v372 = vunpack.c.l.b16 %v173
    %v373 = vunpack.c.l.b16 %v174
    %v374 = vunpack.c.l.b16 %v175
    %v375 = vunpack.c.l.b16 %v176
    %v376 = vunpack.c.l.b16 %v177
    %v377 = vunpack.c.l.b16 %v178
    %v378 = vunpack.c.l.b16 %v179
    %v379 = vunpack.c.l.b16 %v180
    %v380 = vunpack.c.l.b16 %v181
    %v381 = vunpack.c.l.b16 %v182
    %v382 = vunpack.c.l.b16 %v183
    %v383 = vunpack.c.l.b16 %v184
    %v384 = vunpack.c.l.b16 %v185
    %v385 = vunpack.c.l.b16 %v186
    %v386 = vpack.c.b16 %v371, %v370
    %v387 = vpack.c.b16 %v373, %v372
    %v388 = vpack.c.b16 %v375, %v374
    %v389 = vpack.c.b16 %v377, %v376
    %v390 = vpack.c.b16 %v379, %v378
    %v391 = vpack.c.b16 %v381, %v380
    %v392 = vpack.c.b16 %v383, %v382
    %v393 = vpack.c.b16 %v385, %v384
    %402 = vmatprep.subr.bf16.mxu0 0
    %403 = vmatpush1.bf16.msra.mxu0 %v386
    %404 = vmatprep.subr.bf16.mxu0 0
    %405 = vmatpush1.bf16.msra.mxu0 %v387
    %406 = vmatprep.subr.bf16.mxu0 0
    %407 = vmatpush1.bf16.msra.mxu0 %v388
    %408 = vmatprep.subr.bf16.mxu0 0
    %409 = vmatpush1.bf16.msra.mxu0 %v389
    %410 = vmatprep.subr.bf16.mxu0 0
    %411 = vmatpush1.bf16.msra.mxu0 %v390
    %412 = vmatprep.subr.bf16.mxu0 0
    %413 = vmatpush1.bf16.msra.mxu0 %v391
    %414 = vmatprep.subr.bf16.mxu0 0
    %415 = vmatpush1.bf16.msra.mxu0 %v392
    %416 = vmatprep.subr.bf16.mxu0 0
    %417 = vmatpush1.bf16.msra.mxu0 %v393
    %418 = vmatprep.subr.bf16.mxu0 0
    %419 = vmatpush1.bf16.msra.mxu0 0
    %420 = vmatprep.subr.bf16.mxu0 0
    %421 = vmatpush1.bf16.msra.mxu0 0
    %422 = vmatprep.subr.bf16.mxu0 0
    %423 = vmatpush1.bf16.msra.mxu0 0
    %424 = vmatprep.subr.bf16.mxu0 0
    %425 = vmatpush1.bf16.msra.mxu0 0
    %426 = vmatprep.subr.bf16.mxu0 0
    %427 = vmatpush1.bf16.msra.mxu0 0
    %428 = vmatprep.subr.bf16.mxu0 0
    %429 = vmatpush1.bf16.msra.mxu0 0
    %430 = vmatprep.subr.bf16.mxu0 0
    %431 = vmatpush1.bf16.msra.mxu0 0
    %432 = vmatprep.subr.bf16.mxu0 0
    %433 = vmatpush1.bf16.msra.mxu0 0
    %434 = vmatprep.mubr.bf16.mxu0 0
    %435 = vmatmul.mubr.bf16.gmra.mrb[0].mxu0 %v214
    %v436 = vpop.f32.mrb[0].mxu0
    %v437 = vadd.f32 %v327, %v436
    %v438 = vpop.f32.mrb[0].mxu0
    %v439 = vpop.f32.mrb[0].mxu0
    %v440 = vadd.f32 %v330, %v439
    %v441 = vpop.f32.mrb[0].mxu0
    %442 = vmatprep.mubr.bf16.mxu0 0
    %443 = vmatmul.mubr.bf16.gmra.mrb[0].mxu0 %v215
    %v444 = vpop.f32.mrb[0].mxu0
    %v445 = vadd.f32 %v335, %v444
    %v446 = vpop.f32.mrb[0].mxu0
    %v447 = vpop.f32.mrb[0].mxu0
    %v448 = vadd.f32 %v338, %v447
    %v449 = vpop.f32.mrb[0].mxu0
    %450 = vmatprep.mubr.bf16.mxu0 0
    %451 = vmatmul.mubr.bf16.gmra.mrb[0].mxu0 %v350
    %v452 = vpop.f32.mrb[0].mxu0
    %v453 = vadd.f32 %v343, %v452
    %v454 = vpop.f32.mrb[0].mxu0
    %v455 = vpop.f32.mrb[0].mxu0
    %v456 = vpop.f32.mrb[0].mxu0
    %457 = vdwg.mxu0
    %v458 = vld [vmem:[#allocation2] sm:$0xe]
    %v459 = vld [vmem:[%s4] sm:$0xf]
    %v460 = vld [vmem:[%s4 + $0x4] sm:$0xf]
    %v461 = vld [vmem:[%s4 + $0x8] sm:$0xf]
    %v462 = vld [vmem:[%s4 + $0xc] sm:$0xf]
    %v463 = vld [vmem:[%s4 + $0x10] sm:$0xf]
    %v464 = vld [vmem:[%s4 + $0x14] sm:$0xf]
    %v465 = vld [vmem:[%s4 + $0x18] sm:$0xf]
    %v466 = vld [vmem:[%s4 + $0x1c] sm:$0xf]
    %v467 = vld [vmem:[%s4 + $0x20] sm:$0xf]
    %v468 = vld [vmem:[%s4 + $0x24] sm:$0xf]
    %v469 = vld [vmem:[%s4 + $0x28] sm:$0xf]
    %v470 = vld [vmem:[%s4 + $0x2c] sm:$0xf]
    %v471 = vld [vmem:[%s4 + $0x30] sm:$0xf]
    %v472 = vld [vmem:[%s4 + $0x34] sm:$0xf]
    %v473 = vld [vmem:[%s4 + $0x38] sm:$0xf]
    %v474 = vld [vmem:[%s4 + $0x3c] sm:$0xf]
    %v476 = vunpack.c.l.b16 %v458
    %v477 = vpack.c.b16 %v210, %v476
    %vm478 = vcmask 1046528
    %v479 = vrot.slane %v477, 1
    %v480 = vrot.slane %v215, 1
    %v481 = vsel %vm478, %v479, %v480
    %v482 = vrot.slane %v216, 1
    %v483 = vsel %vm478, %v480, %v482
    %v503 = vunpack.c.l.b16 %v459
    %v504 = vunpack.c.l.b16 %v460
    %v505 = vunpack.c.l.b16 %v461
    %v506 = vunpack.c.l.b16 %v462
    %v507 = vunpack.c.l.b16 %v463
    %v508 = vunpack.c.l.b16 %v464
    %v509 = vunpack.c.l.b16 %v465
    %v510 = vunpack.c.l.b16 %v466
    %v511 = vunpack.c.l.b16 %v467
    %v512 = vunpack.c.l.b16 %v468
    %v513 = vunpack.c.l.b16 %v469
    %v514 = vunpack.c.l.b16 %v470
    %v515 = vunpack.c.l.b16 %v471
    %v516 = vunpack.c.l.b16 %v472
    %v517 = vunpack.c.l.b16 %v473
    %v518 = vunpack.c.l.b16 %v474
    %v519 = vpack.c.b16 %v504, %v503
    %v520 = vpack.c.b16 %v506, %v505
    %v521 = vpack.c.b16 %v508, %v507
    %v522 = vpack.c.b16 %v510, %v509
    %v523 = vpack.c.b16 %v512, %v511
    %v524 = vpack.c.b16 %v514, %v513
    %v525 = vpack.c.b16 %v516, %v515
    %v526 = vpack.c.b16 %v518, %v517
    %535 = vmatprep.subr.bf16.mxu0 0
    %536 = vmatpush1.bf16.msra.mxu0 %v519
    %537 = vmatprep.subr.bf16.mxu0 0
    %538 = vmatpush1.bf16.msra.mxu0 %v520
    %539 = vmatprep.subr.bf16.mxu0 0
    %540 = vmatpush1.bf16.msra.mxu0 %v521
    %541 = vmatprep.subr.bf16.mxu0 0
    %542 = vmatpush1.bf16.msra.mxu0 %v522
    %543 = vmatprep.subr.bf16.mxu0 0
    %544 = vmatpush1.bf16.msra.mxu0 %v523
    %545 = vmatprep.subr.bf16.mxu0 0
    %546 = vmatpush1.bf16.msra.mxu0 %v524
    %547 = vmatprep.subr.bf16.mxu0 0
    %548 = vmatpush1.bf16.msra.mxu0 %v525
    %549 = vmatprep.subr.bf16.mxu0 0
    %550 = vmatpush1.bf16.msra.mxu0 %v526
    %551 = vmatprep.subr.bf16.mxu0 0
    %552 = vmatpush1.bf16.msra.mxu0 0
    %553 = vmatprep.subr.bf16.mxu0 0
    %554 = vmatpush1.bf16.msra.mxu0 0
    %555 = vmatprep.subr.bf16.mxu0 0
    %556 = vmatpush1.bf16.msra.mxu0 0
    %557 = vmatprep.subr.bf16.mxu0 0
    %558 = vmatpush1.bf16.msra.mxu0 0
    %559 = vmatprep.subr.bf16.mxu0 0
    %560 = vmatpush1.bf16.msra.mxu0 0
    %561 = vmatprep.subr.bf16.mxu0 0
    %562 = vmatpush1.bf16.msra.mxu0 0
    %563 = vmatprep.subr.bf16.mxu0 0
    %564 = vmatpush1.bf16.msra.mxu0 0
    %565 = vmatprep.subr.bf16.mxu0 0
    %566 = vmatpush1.bf16.msra.mxu0 0
    %567 = vmatprep.mubr.bf16.mxu0 0
    %568 = vmatmul.mubr.bf16.gmra.mrb[0].mxu0 %v481
    %v569 = vpop.f32.mrb[0].mxu0
    %v570 = vadd.f32 0.0, %v569
    %v571 = vpop.f32.mrb[0].mxu0
    %v572 = vpop.f32.mrb[0].mxu0
    %v573 = vadd.f32 0.0, %v572
    %v574 = vpop.f32.mrb[0].mxu0
    %575 = vmatprep.mubr.bf16.mxu0 0
    %576 = vmatmul.mubr.bf16.gmra.mrb[0].mxu0 %v483
    %v577 = vpop.f32.mrb[0].mxu0
    %v578 = vadd.f32 0.0, %v577
    %v579 = vpop.f32.mrb[0].mxu0
    %v580 = vpop.f32.mrb[0].mxu0
    %v581 = vadd.f32 0.0, %v580
    %v582 = vpop.f32.mrb[0].mxu0
    %583 = vmatprep.mubr.bf16.mxu0 0
    %584 = vmatmul.mubr.bf16.gmra.mrb[0].mxu0 %v482
    %v585 = vpop.f32.mrb[0].mxu0
    %v586 = vadd.f32 0.0, %v585
    %v587 = vpop.f32.mrb[0].mxu0
    %v588 = vpop.f32.mrb[0].mxu0
    %v589 = vpop.f32.mrb[0].mxu0
    %590 = vdwg.mxu0
    %v591 = vadd.f32 %v437, %v570
    %v592 = vadd.f32 %v440, %v573
    %v593 = vadd.f32 %v445, %v578
    %v594 = vadd.f32 %v448, %v581
    %v595 = vadd.f32 %v453, %v586
    %v596 = vld [vmem:[%s5] sm:$0x1]
    %v598 = vlaneseq
    %v599 = vshrl.u32 %v598, 7
    %v600 = vsub.s32 0, %v599
    %v601 = vrot.slane %v596, %v600
    %v603 = vmul.f32 %v591, %v601
    %v604 = vmul.f32 %v592, %v601
    %v605 = vmul.f32 %v593, %v601
    %v606 = vmul.f32 %v594, %v601
    %v607 = vmul.f32 %v595, %v601
    %v608 = vld [vmem:[%s6] sm:$0x1]
    %v610 = vlaneseq
    %v611 = vshrl.u32 %v610, 7
    %v612 = vsub.s32 0, %v611
    %v613 = vrot.slane %v608, %v612
    %v615 = vadd.f32 %v603, %v613
    %v616 = vadd.f32 %v604, %v613
    %v617 = vadd.f32 %v605, %v613
    %v618 = vadd.f32 %v606, %v613
    %v619 = vadd.f32 %v607, %v613
    %v620 = vmax.f32 %v615, 0.0
    %v621 = vmax.f32 %v616, 0.0
    %v622 = vmax.f32 %v617, 0.0
    %v623 = vmax.f32 %v618, 0.0
    %v624 = vmax.f32 %v619, 0.0
    %v625 = vpack.c.bf16 %v621, %v620
    %v626 = vpack.c.bf16 %v623, %v622
    %v627 = vpack.c.bf16 %v624, %v624
    %v631 = vunpack.c.l.b16 %v625
    %v632 = vunpack.c.h.b16 %v625
    %v633 = vunpack.c.l.b16 %v626
    %v634 = vunpack.c.h.b16 %v626
    %v635 = vunpack.c.l.b16 %v627
    %v636 = vpack.c.b16 %v631, %v631
    %v637 = vpack.c.b16 %v632, %v632
    %v638 = vpack.c.b16 %v633, %v633
    %v639 = vpack.c.b16 %v634, %v634
    %v640 = vpack.c.b16 %v635, %v635
    %vm641 = vsmask.f32 256
    %vm642 = vsmask.f32 4368
    %vm643 = vmor %vm641, %vm642
    %v645 = vshrl.u32 %v636, 16
    %v647 = vrot.slane %v645, 7
    %v648 = vshll.u32 %v636, 16
    %v650 = vor.u32 %v647, %v648
    %v651 = vrot.slane %v647, 4
    %v653 = vshrl.u32 %v637, 16
    %v655 = vrot.slane %v653, 7
    %v656 = vshll.u32 %v637, 16
    %v658 = vor.u32 %v655, %v656
    %v659 = vsel %vm643, %v651, %v658
    %v660 = vrot.slane %v655, 4
    %v662 = vshrl.u32 %v638, 16
    %v664 = vrot.slane %v662, 7
    %v665 = vshll.u32 %v638, 16
    %v667 = vor.u32 %v664, %v665
    %v668 = vsel %vm643, %v660, %v667
    %v669 = vrot.slane %v664, 4
    %v671 = vshrl.u32 %v639, 16
    %v673 = vrot.slane %v671, 7
    %v674 = vshll.u32 %v639, 16
    %v676 = vor.u32 %v673, %v674
    %v677 = vsel %vm643, %v669, %v676
    %v678 = vrot.slane %v673, 4
    %v680 = vshrl.u32 %v640, 16
    %v682 = vrot.slane %v680, 7
    %v683 = vshll.u32 %v640, 16
    %v685 = vor.u32 %v682, %v683
    %v686 = vsel %vm643, %v678, %v685
    %vm692 = vcmask 519168
    %vm693 = vsmask.f32 7938
    %vm694 = vmand %vm692, %vm693
    %v695 = vsel %vm694, %v650, %v166
    %696 = vst [vmem:[#allocation2] sm:$0xf] %v695
    %697 = vst.msk [vmem:[#allocation2 + $0x4] sm:$0xf] %vm83, %v659
    %698 = vst.msk [vmem:[#allocation2 + $0x8] sm:$0xf] %vm83, %v668
    %699 = vst.msk [vmem:[#allocation2 + $0xc] sm:$0xf] %vm83, %v677
    %vm700 = vcmask 518144
    %vm701 = vsmask.f32 2304
    %vm702 = vmand %vm700, %vm701
    %v703 = vld [vmem:[#allocation2 + $0x10] sm:$0x7]
    %v704 = vsel %vm702, %v686, %v703
    %705 = vst [vmem:[#allocation2 + $0x10] sm:$0x7] %v704
    %vm706 = vmand %vm70, %vm693
    %v707 = vld [vmem:[#allocation2] sm:$0x1]
    %v708 = vsel %vm706, 0, %v707
    %709 = vst [vmem:[#allocation2] sm:$0x1] %v708
    %vm710 = vcmask 1041409
    %vm711 = vsmask.f32 1280
    %vm712 = vmand %vm710, %vm711
    %v713 = vld [vmem:[#allocation2 + $0x8] sm:$0x2]
    %v714 = vsel %vm712, 0, %v713
    %715 = vst [vmem:[#allocation2 + $0x8] sm:$0x2] %v714
    %vm716 = vsmask.f32 7942
    %vm717 = vmand %vm710, %vm716
    %v718 = vld [vmem:[#allocation2 + $0x8] sm:$0x2]
    %v719 = vsel %vm717, 0, %v718
    %720 = vst [vmem:[#allocation2 + $0x8] sm:$0x2] %v719
    %vm721 = vcmask 1042434
    %vm722 = vmand %vm721, %vm701
    %v723 = vld [vmem:[#allocation2 + $0x10] sm:$0x4]
    %v724 = vsel %vm722, 0, %v723
    %725 = vst [vmem:[#allocation2 + $0x10] sm:$0x4] %v724
    %v726 = vld [vmem:[#allocation2] sm:$0xf]
    %v727 = vld [vmem:[#allocation2 + $0x4] sm:$0xf]
    %v728 = vld [vmem:[#allocation2 + $0x8] sm:$0xf]
    %v729 = vld [vmem:[#allocation2 + $0xc] sm:$0xf]
    %v730 = vld [vmem:[#allocation2 + $0x10] sm:$0x3]
    %v731 = vld [vmem:[%s7] sm:$0xf]
    %v732 = vld [vmem:[%s7 + $0x4] sm:$0xf]
    %v733 = vld [vmem:[%s7 + $0x8] sm:$0xf]
    %v734 = vld [vmem:[%s7 + $0xc] sm:$0xf]
    %v735 = vld [vmem:[%s7 + $0x10] sm:$0xf]
    %v736 = vld [vmem:[%s7 + $0x14] sm:$0xf]
    %v737 = vld [vmem:[%s7 + $0x18] sm:$0xf]
    %v738 = vld [vmem:[%s7 + $0x1c] sm:$0xf]
    %v739 = vld [vmem:[%s7 + $0x20] sm:$0xf]
    %v740 = vld [vmem:[%s7 + $0x24] sm:$0xf]
    %v741 = vld [vmem:[%s7 + $0x28] sm:$0xf]
    %v742 = vld [vmem:[%s7 + $0x2c] sm:$0xf]
    %v743 = vld [vmem:[%s7 + $0x30] sm:$0xf]
    %v744 = vld [vmem:[%s7 + $0x34] sm:$0xf]
    %v745 = vld [vmem:[%s7 + $0x38] sm:$0xf]
    %v746 = vld [vmem:[%s7 + $0x3c] sm:$0xf]
    %v747 = vld [vmem:[#allocation2 + $0x10] sm:$0x7]
    %v748 = vld [vmem:[%s8] sm:$0xf]
    %v749 = vld [vmem:[%s8 + $0x4] sm:$0xf]
    %v750 = vld [vmem:[%s8 + $0x8] sm:$0xf]
    %v751 = vld [vmem:[%s8 + $0xc] sm:$0xf]
    %v752 = vld [vmem:[%s8 + $0x10] sm:$0xf]
    %v753 = vld [vmem:[%s8 + $0x14] sm:$0xf]
    %v754 = vld [vmem:[%s8 + $0x18] sm:$0xf]
    %v755 = vld [vmem:[%s8 + $0x1c] sm:$0xf]
    %v756 = vld [vmem:[%s8 + $0x20] sm:$0xf]
    %v757 = vld [vmem:[%s8 + $0x24] sm:$0xf]
    %v758 = vld [vmem:[%s8 + $0x28] sm:$0xf]
    %v759 = vld [vmem:[%s8 + $0x2c] sm:$0xf]
    %v760 = vld [vmem:[%s8 + $0x30] sm:$0xf]
    %v761 = vld [vmem:[%s8 + $0x34] sm:$0xf]
    %v762 = vld [vmem:[%s8 + $0x38] sm:$0xf]
    %v763 = vld [vmem:[%s8 + $0x3c] sm:$0xf]
    %v769 = vunpack.c.l.b16 %v726
    %v770 = vunpack.c.l.b16 %v727
    %v771 = vunpack.c.l.b16 %v728
    %v772 = vunpack.c.l.b16 %v729
    %v773 = vunpack.c.l.b16 %v747
    %v774 = vpack.c.b16 %v770, %v769
    %v775 = vpack.c.b16 %v772, %v771
    %v776 = vpack.c.b16 %v773, %v773
    %v778 = vshrl.u32 %v774, 16
    %v780 = vshll.u32 %v774, 16
    %v782 = vrot.slane %v780, 1
    %v783 = vor.u32 %v778, %v782
    %v785 = vshll.u32 %v775, 16
    %v787 = vrot.slane %v785, 1
    %v788 = vsel %vm217, %v783, %v787
    %v789 = vshrl.u32 %v775, 16
    %v791 = vor.u32 %v789, %v787
    %v793 = vshll.u32 %v776, 16
    %v795 = vrot.slane %v793, 1
    %v796 = vsel %vm217, %v791, %v795
    %v797 = vshrl.u32 %v776, 16
    %v799 = vor.u32 %v797, %v795
    %v819 = vunpack.c.l.b16 %v748
    %v820 = vunpack.c.l.b16 %v749
    %v821 = vunpack.c.l.b16 %v750
    %v822 = vunpack.c.l.b16 %v751
    %v823 = vunpack.c.l.b16 %v752
    %v824 = vunpack.c.l.b16 %v753
    %v825 = vunpack.c.l.b16 %v754
    %v826 = vunpack.c.l.b16 %v755
    %v827 = vunpack.c.l.b16 %v756
    %v828 = vunpack.c.l.b16 %v757
    %v829 = vunpack.c.l.b16 %v758
    %v830 = vunpack.c.l.b16 %v759
    %v831 = vunpack.c.l.b16 %v760
    %v832 = vunpack.c.l.b16 %v761
    %v833 = vunpack.c.l.b16 %v762
    %v834 = vunpack.c.l.b16 %v763
    %v835 = vpack.c.b16 %v820, %v819
    %v836 = vpack.c.b16 %v822, %v821
    %v837 = vpack.c.b16 %v824, %v823
    %v838 = vpack.c.b16 %v826, %v825
    %v839 = vpack.c.b16 %v828, %v827
    %v840 = vpack.c.b16 %v830, %v829
    %v841 = vpack.c.b16 %v832, %v831
    %v842 = vpack.c.b16 %v834, %v833
    %851 = vmatprep.subr.bf16.mxu0 0
    %852 = vmatpush1.bf16.msra.mxu0 %v835
    %853 = vmatprep.subr.bf16.mxu0 0
    %854 = vmatpush1.bf16.msra.mxu0 %v836
    %855 = vmatprep.subr.bf16.mxu0 0
    %856 = vmatpush1.bf16.msra.mxu0 %v837
    %857 = vmatprep.subr.bf16.mxu0 0
    %858 = vmatpush1.bf16.msra.mxu0 %v838
    %859 = vmatprep.subr.bf16.mxu0 0
    %860 = vmatpush1.bf16.msra.mxu0 %v839
    %861 = vmatprep.subr.bf16.mxu0 0
    %862 = vmatpush1.bf16.msra.mxu0 %v840
    %863 = vmatprep.subr.bf16.mxu0 0
    %864 = vmatpush1.bf16.msra.mxu0 %v841
    %865 = vmatprep.subr.bf16.mxu0 0
    %866 = vmatpush1.bf16.msra.mxu0 %v842
    %867 = vmatprep.subr.bf16.mxu0 0
    %868 = vmatpush1.bf16.msra.mxu0 0
    %869 = vmatprep.subr.bf16.mxu0 0
    %870 = vmatpush1.bf16.msra.mxu0 0
    %871 = vmatprep.subr.bf16.mxu0 0
    %872 = vmatpush1.bf16.msra.mxu0 0
    %873 = vmatprep.subr.bf16.mxu0 0
    %874 = vmatpush1.bf16.msra.mxu0 0
    %875 = vmatprep.subr.bf16.mxu0 0
    %876 = vmatpush1.bf16.msra.mxu0 0
    %877 = vmatprep.subr.bf16.mxu0 0
    %878 = vmatpush1.bf16.msra.mxu0 0
    %879 = vmatprep.subr.bf16.mxu0 0
    %880 = vmatpush1.bf16.msra.mxu0 0
    %881 = vmatprep.subr.bf16.mxu0 0
    %882 = vmatpush1.bf16.msra.mxu0 0
    %883 = vmatprep.mubr.bf16.mxu0 0
    %884 = vmatmul.mubr.bf16.gmra.mrb[0].mxu0 %v788
    %v885 = vpop.f32.mrb[0].mxu0
    %v886 = vadd.f32 0.0, %v885
    %v887 = vpop.f32.mrb[0].mxu0
    %v888 = vpop.f32.mrb[0].mxu0
    %v889 = vadd.f32 0.0, %v888
    %v890 = vpop.f32.mrb[0].mxu0
    %891 = vmatprep.mubr.bf16.mxu0 0
    %892 = vmatmul.mubr.bf16.gmra.mrb[0].mxu0 %v796
    %v893 = vpop.f32.mrb[0].mxu0
    %v894 = vadd.f32 0.0, %v893
    %v895 = vpop.f32.mrb[0].mxu0
    %v896 = vpop.f32.mrb[0].mxu0
    %v897 = vadd.f32 0.0, %v896
    %v898 = vpop.f32.mrb[0].mxu0
    %899 = vmatprep.mubr.bf16.mxu0 0
    %900 = vmatmul.mubr.bf16.gmra.mrb[0].mxu0 %v799
    %v901 = vpop.f32.mrb[0].mxu0
    %v902 = vadd.f32 0.0, %v901
    %v903 = vpop.f32.mrb[0].mxu0
    %v904 = vpop.f32.mrb[0].mxu0
    %v905 = vpop.f32.mrb[0].mxu0
    %906 = vdwg.mxu0
    %v908 = vunpack.c.l.b16 %v730
    %v909 = vpack.c.b16 %v908, %v908
    %v929 = vunpack.c.l.b16 %v731
    %v930 = vunpack.c.l.b16 %v732
    %v931 = vunpack.c.l.b16 %v733
    %v932 = vunpack.c.l.b16 %v734
    %v933 = vunpack.c.l.b16 %v735
    %v934 = vunpack.c.l.b16 %v736
    %v935 = vunpack.c.l.b16 %v737
    %v936 = vunpack.c.l.b16 %v738
    %v937 = vunpack.c.l.b16 %v739
    %v938 = vunpack.c.l.b16 %v740
    %v939 = vunpack.c.l.b16 %v741
    %v940 = vunpack.c.l.b16 %v742
    %v941 = vunpack.c.l.b16 %v743
    %v942 = vunpack.c.l.b16 %v744
    %v943 = vunpack.c.l.b16 %v745
    %v944 = vunpack.c.l.b16 %v746
    %v945 = vpack.c.b16 %v930, %v929
    %v946 = vpack.c.b16 %v932, %v931
    %v947 = vpack.c.b16 %v934, %v933
    %v948 = vpack.c.b16 %v936, %v935
    %v949 = vpack.c.b16 %v938, %v937
    %v950 = vpack.c.b16 %v940, %v939
    %v951 = vpack.c.b16 %v942, %v941
    %v952 = vpack.c.b16 %v944, %v943
    %961 = vmatprep.subr.bf16.mxu0 0
    %962 = vmatpush1.bf16.msra.mxu0 %v945
    %963 = vmatprep.subr.bf16.mxu0 0
    %964 = vmatpush1.bf16.msra.mxu0 %v946
    %965 = vmatprep.subr.bf16.mxu0 0
    %966 = vmatpush1.bf16.msra.mxu0 %v947
    %967 = vmatprep.subr.bf16.mxu0 0
    %968 = vmatpush1.bf16.msra.mxu0 %v948
    %969 = vmatprep.subr.bf16.mxu0 0
    %970 = vmatpush1.bf16.msra.mxu0 %v949
    %971 = vmatprep.subr.bf16.mxu0 0
    %972 = vmatpush1.bf16.msra.mxu0 %v950
    %973 = vmatprep.subr.bf16.mxu0 0
    %974 = vmatpush1.bf16.msra.mxu0 %v951
    %975 = vmatprep.subr.bf16.mxu0 0
    %976 = vmatpush1.bf16.msra.mxu0 %v952
    %977 = vmatprep.subr.bf16.mxu0 0
    %978 = vmatpush1.bf16.msra.mxu0 0
    %979 = vmatprep.subr.bf16.mxu0 0
    %980 = vmatpush1.bf16.msra.mxu0 0
    %981 = vmatprep.subr.bf16.mxu0 0
    %982 = vmatpush1.bf16.msra.mxu0 0
    %983 = vmatprep.subr.bf16.mxu0 0
    %984 = vmatpush1.bf16.msra.mxu0 0
    %985 = vmatprep.subr.bf16.mxu0 0
    %986 = vmatpush1.bf16.msra.mxu0 0
    %987 = vmatprep.subr.bf16.mxu0 0
    %988 = vmatpush1.bf16.msra.mxu0 0
    %989 = vmatprep.subr.bf16.mxu0 0
    %990 = vmatpush1.bf16.msra.mxu0 0
    %991 = vmatprep.subr.bf16.mxu0 0
    %992 = vmatpush1.bf16.msra.mxu0 0
    %993 = vmatprep.mubr.bf16.mxu0 0
    %994 = vmatmul.mubr.bf16.gmra.mrb[0].mxu0 %v774
    %v995 = vpop.f32.mrb[0].mxu0
    %v996 = vadd.f32 %v886, %v995
    %v997 = vpop.f32.mrb[0].mxu0
    %v998 = vpop.f32.mrb[0].mxu0
    %v999 = vadd.f32 %v889, %v998
    %v1000 = vpop.f32.mrb[0].mxu0
    %1001 = vmatprep.mubr.bf16.mxu0 0
    %1002 = vmatmul.mubr.bf16.gmra.mrb[0].mxu0 %v775
    %v1003 = vpop.f32.mrb[0].mxu0
    %v1004 = vadd.f32 %v894, %v1003
    %v1005 = vpop.f32.mrb[0].mxu0
    %v1006 = vpop.f32.mrb[0].mxu0
    %v1007 = vadd.f32 %v897, %v1006
    %v1008 = vpop.f32.mrb[0].mxu0
    %1009 = vmatprep.mubr.bf16.mxu0 0
    %1010 = vmatmul.mubr.bf16.gmra.mrb[0].mxu0 %v909
    %v1011 = vpop.f32.mrb[0].mxu0
    %v1012 = vadd.f32 %v902, %v1011
    %v1013 = vpop.f32.mrb[0].mxu0
    %v1014 = vpop.f32.mrb[0].mxu0
    %v1015 = vpop.f32.mrb[0].mxu0
    %1016 = vdwg.mxu0
    %v1017 = vld [vmem:[#allocation2] sm:$0xe]
    %v1018 = vld [vmem:[%s9] sm:$0xf]
    %v1019 = vld [vmem:[%s9 + $0x4] sm:$0xf]
    %v1020 = vld [vmem:[%s9 + $0x8] sm:$0xf]
    %v1021 = vld [vmem:[%s9 + $0xc] sm:$0xf]
    %v1022 = vld [vmem:[%s9 + $0x10] sm:$0xf]
    %v1023 = vld [vmem:[%s9 + $0x14] sm:$0xf]
    %v1024 = vld [vmem:[%s9 + $0x18] sm:$0xf]
    %v1025 = vld [vmem:[%s9 + $0x1c] sm:$0xf]
    %v1026 = vld [vmem:[%s9 + $0x20] sm:$0xf]
    %v1027 = vld [vmem:[%s9 + $0x24] sm:$0xf]
    %v1028 = vld [vmem:[%s9 + $0x28] sm:$0xf]
    %v1029 = vld [vmem:[%s9 + $0x2c] sm:$0xf]
    %v1030 = vld [vmem:[%s9 + $0x30] sm:$0xf]
    %v1031 = vld [vmem:[%s9 + $0x34] sm:$0xf]
    %v1032 = vld [vmem:[%s9 + $0x38] sm:$0xf]
    %v1033 = vld [vmem:[%s9 + $0x3c] sm:$0xf]
    %v1035 = vunpack.c.l.b16 %v1017
    %v1036 = vpack.c.b16 %v770, %v1035
    %v1037 = vrot.slane %v1036, 1
    %v1038 = vrot.slane %v775, 1
    %v1039 = vsel %vm478, %v1037, %v1038
    %v1040 = vrot.slane %v776, 1
    %v1041 = vsel %vm478, %v1038, %v1040
    %v1061 = vunpack.c.l.b16 %v1018
    %v1062 = vunpack.c.l.b16 %v1019
    %v1063 = vunpack.c.l.b16 %v1020
    %v1064 = vunpack.c.l.b16 %v1021
    %v1065 = vunpack.c.l.b16 %v1022
    %v1066 = vunpack.c.l.b16 %v1023
    %v1067 = vunpack.c.l.b16 %v1024
    %v1068 = vunpack.c.l.b16 %v1025
    %v1069 = vunpack.c.l.b16 %v1026
    %v1070 = vunpack.c.l.b16 %v1027
    %v1071 = vunpack.c.l.b16 %v1028
    %v1072 = vunpack.c.l.b16 %v1029
    %v1073 = vunpack.c.l.b16 %v1030
    %v1074 = vunpack.c.l.b16 %v1031
    %v1075 = vunpack.c.l.b16 %v1032
    %v1076 = vunpack.c.l.b16 %v1033
    %v1077 = vpack.c.b16 %v1062, %v1061
    %v1078 = vpack.c.b16 %v1064, %v1063
    %v1079 = vpack.c.b16 %v1066, %v1065
    %v1080 = vpack.c.b16 %v1068, %v1067
    %v1081 = vpack.c.b16 %v1070, %v1069
    %v1082 = vpack.c.b16 %v1072, %v1071
    %v1083 = vpack.c.b16 %v1074, %v1073
    %v1084 = vpack.c.b16 %v1076, %v1075
    %1093 = vmatprep.subr.bf16.mxu0 0
    %1094 = vmatpush1.bf16.msra.mxu0 %v1077
    %1095 = vmatprep.subr.bf16.mxu0 0
    %1096 = vmatpush1.bf16.msra.mxu0 %v1078
    %1097 = vmatprep.subr.bf16.mxu0 0
    %1098 = vmatpush1.bf16.msra.mxu0 %v1079
    %1099 = vmatprep.subr.bf16.mxu0 0
    %1100 = vmatpush1.bf16.msra.mxu0 %v1080
    %1101 = vmatprep.subr.bf16.mxu0 0
    %1102 = vmatpush1.bf16.msra.mxu0 %v1081
    %1103 = vmatprep.subr.bf16.mxu0 0
    %1104 = vmatpush1.bf16.msra.mxu0 %v1082
    %1105 = vmatprep.subr.bf16.mxu0 0
    %1106 = vmatpush1.bf16.msra.mxu0 %v1083
    %1107 = vmatprep.subr.bf16.mxu0 0
    %1108 = vmatpush1.bf16.msra.mxu0 %v1084
    %1109 = vmatprep.subr.bf16.mxu0 0
    %1110 = vmatpush1.bf16.msra.mxu0 0
    %1111 = vmatprep.subr.bf16.mxu0 0
    %1112 = vmatpush1.bf16.msra.mxu0 0
    %1113 = vmatprep.subr.bf16.mxu0 0
    %1114 = vmatpush1.bf16.msra.mxu0 0
    %1115 = vmatprep.subr.bf16.mxu0 0
    %1116 = vmatpush1.bf16.msra.mxu0 0
    %1117 = vmatprep.subr.bf16.mxu0 0
    %1118 = vmatpush1.bf16.msra.mxu0 0
    %1119 = vmatprep.subr.bf16.mxu0 0
    %1120 = vmatpush1.bf16.msra.mxu0 0
    %1121 = vmatprep.subr.bf16.mxu0 0
    %1122 = vmatpush1.bf16.msra.mxu0 0
    %1123 = vmatprep.subr.bf16.mxu0 0
    %1124 = vmatpush1.bf16.msra.mxu0 0
    %1125 = vmatprep.mubr.bf16.mxu0 0
    %1126 = vmatmul.mubr.bf16.gmra.mrb[0].mxu0 %v1039
    %v1127 = vpop.f32.mrb[0].mxu0
    %v1128 = vadd.f32 0.0, %v1127
    %v1129 = vpop.f32.mrb[0].mxu0
    %v1130 = vpop.f32.mrb[0].mxu0
    %v1131 = vadd.f32 0.0, %v1130
    %v1132 = vpop.f32.mrb[0].mxu0
    %1133 = vmatprep.mubr.bf16.mxu0 0
    %1134 = vmatmul.mubr.bf16.gmra.mrb[0].mxu0 %v1041
    %v1135 = vpop.f32.mrb[0].mxu0
    %v1136 = vadd.f32 0.0, %v1135
    %v1137 = vpop.f32.mrb[0].mxu0
    %v1138 = vpop.f32.mrb[0].mxu0
    %v1139 = vadd.f32 0.0, %v1138
    %v1140 = vpop.f32.mrb[0].mxu0
    %1141 = vmatprep.mubr.bf16.mxu0 0
    %1142 = vmatmul.mubr.bf16.gmra.mrb[0].mxu0 %v1040
    %v1143 = vpop.f32.mrb[0].mxu0
    %v1144 = vadd.f32 0.0, %v1143
    %v1145 = vpop.f32.mrb[0].mxu0
    %v1146 = vpop.f32.mrb[0].mxu0
    %v1147 = vpop.f32.mrb[0].mxu0
    %1148 = vdwg.mxu0
    %v1149 = vadd.f32 %v996, %v1128
    %v1150 = vadd.f32 %v999, %v1131
    %v1151 = vadd.f32 %v1004, %v1136
    %v1152 = vadd.f32 %v1007, %v1139
    %v1153 = vadd.f32 %v1012, %v1144
    %v1154 = vld [vmem:[%s10] sm:$0x1]
    %v1156 = vlaneseq
    %v1157 = vshrl.u32 %v1156, 7
    %v1158 = vsub.s32 0, %v1157
    %v1159 = vrot.slane %v1154, %v1158
    %v1161 = vmul.f32 %v1149, %v1159
    %v1162 = vmul.f32 %v1150, %v1159
    %v1163 = vmul.f32 %v1151, %v1159
    %v1164 = vmul.f32 %v1152, %v1159
    %v1165 = vmul.f32 %v1153, %v1159
    %v1166 = vld [vmem:[%s11] sm:$0x1]
    %v1168 = vlaneseq
    %v1169 = vshrl.u32 %v1168, 7
    %v1170 = vsub.s32 0, %v1169
    %v1171 = vrot.slane %v1166, %v1170
    %v1173 = vadd.f32 %v1161, %v1171
    %v1174 = vadd.f32 %v1162, %v1171
    %v1175 = vadd.f32 %v1163, %v1171
    %v1176 = vadd.f32 %v1164, %v1171
    %v1177 = vadd.f32 %v1165, %v1171
    %v1178 = vmax.f32 %v1173, 0.0
    %v1179 = vmax.f32 %v1174, 0.0
    %v1180 = vmax.f32 %v1175, 0.0
    %v1181 = vmax.f32 %v1176, 0.0
    %v1182 = vmax.f32 %v1177, 0.0
    %1183 = vst [vmem:[#allocation6 - $0x1] sm:$0xfe] %v1178
    %1184 = vst [vmem:[#allocation6 + $0x7] sm:$0xff] %v1179
    %1185 = vst [vmem:[#allocation6 + $0xf] sm:$0x1] %v1180
    %1186 = vst [vmem:[#allocation6 + $0xd] sm:$0xf8] %v1180
    %1187 = vst [vmem:[#allocation6 + $0x15] sm:$0xff] %v1181
    %1188 = vst [vmem:[#allocation6 + $0x1d] sm:$0x7] %v1182
    // Predicated region
    $region54: #{tpu_custom_call.1} parent=1 // pred_check
      _
    $region55: #{tpu_custom_call.1} parent=1 // pred_check_branch
      %1190 = sbr.rel (0) target = $region57
    $region56: #{tpu_custom_call.1} parent=1 // pred_region
      %s1192 = ssub.s32 512, 512
      %1193 = vsyncadd [#allocation5], %s1192
      %s1194 = sshll.u32 [#allocation6], 4
      %s1195 = int_to_ptr.vmem [resolvable:$true] %s1194
      %1200 = dma.vmem_to_hbm [thread:$0]  %s1195, 512, %s12, [#allocation5], 128, 128, 8
    $region57: #{tpu_custom_call.1} parent=1 // pred_fallthru
      _
    // Predicated region
    $region58: #{tpu_custom_call.1} parent=1 // pred_check
      _
    $region59: #{tpu_custom_call.1} parent=1 // pred_check_branch
      %1202 = sbr.rel (0) target = $region61
    $region60: #{tpu_custom_call.1} parent=1 // pred_region
      %1203 = dma.done [#allocation5], 512
    $region61: #{tpu_custom_call.1} parent=1 // pred_fallthru
      _
    %1204 = vsyncpa [#allocation4], 1
    %1205 = vsyncpa [#allocation5], 1

</llo_original>
